<compile_context>
chip_gen: v7x
topology: tpu7x:2x2x1
jax: 0.10.0
libtpu: 0.0.40
codegen_flags: <defaults>
</compile_context>

<pallas_src>
import functools

import jax
import jax.numpy as jnp
import numpy as np
from jax.experimental import pallas as pl
from jax.experimental.pallas import tpu as pltpu


def ace_stats_kernel(pred_ref, lab_ref, out_ref, *, width, lane_out):
    """One grid step: pred_ref/lab_ref are (1, Csub, HW); out_ref is (1, 7, Csub, lane_out)."""
    x = pred_ref[0].astype(jnp.float32)    # (Csub, HW)
    lab = lab_ref[0].astype(jnp.float32)   # (Csub, HW)
    Csub, HW = x.shape
    W = width
    INF = jnp.float32(jnp.inf)

    # Lane-only boundary masks, computed once at (1, HW); jnp.where broadcasts
    # them over the sublane (channel) axis.
    j = jax.lax.broadcasted_iota(jnp.int32, (1, HW), dimension=1)
    col = j % W
    col_first = col == 0            # no west neighbour
    col_last = col == (W - 1)       # no east neighbour
    row_first = j < W               # no north neighbour
    row_last = j >= (HW - W)        # no south neighbour

    # pltpu.roll requires non-negative shifts; roll(v, s)[j] == v[(j - s) % HW],
    # so a "-k" shift is expressed as "HW - k".  Wrapped lanes are always masked.
    def east(v):   # v[:, j+1]
        return pltpu.roll(v, shift=HW - 1, axis=1)

    def west(v):   # v[:, j-1]
        return pltpu.roll(v, shift=1, axis=1)

    def south(v):  # v[:, j+W]
        return pltpu.roll(v, shift=HW - W, axis=1)

    def north(v):  # v[:, j-W]
        return pltpu.roll(v, shift=W, axis=1)

    x_e = east(x)
    x_w = west(x)

    # ---- separable 3x3 min pool (OOB ignored, i.e. +inf — matches max_pool2d) --
    rmin = jnp.minimum(x, jnp.minimum(jnp.where(col_last, INF, x_e),
                                      jnp.where(col_first, INF, x_w)))
    minp = jnp.minimum(rmin, jnp.minimum(jnp.where(row_last, INF, south(rmin)),
                                         jnp.where(row_first, INF, north(rmin))))

    # ---- separable 3x3 max pool of the min pool (OOB -> -inf) -----------------
    rmax = jnp.maximum(minp, jnp.maximum(jnp.where(col_last, -INF, east(minp)),
                                         jnp.where(col_first, -INF, west(minp))))
    maxp = jnp.maximum(rmax, jnp.maximum(jnp.where(row_last, -INF, south(rmax)),
                                         jnp.where(row_first, -INF, north(rmax))))

    # contour = relu(maxp - minp) >= 0, so length == |contour| == contour
    length = jnp.maximum(maxp - minp, 0.0)

    # ---- Laplace conv (ones(3,3), centre -8, zero pad) = box3x3(x) - 9*x -------
    rsum = x + jnp.where(col_last, 0.0, x_e) + jnp.where(col_first, 0.0, x_w)
    box = (rsum
           + jnp.where(row_last, 0.0, south(rsum))
           + jnp.where(row_first, 0.0, north(rsum)))
    ad = jnp.abs(box - 9.0 * x)            # |diff|

    lab2 = lab * lab                       # shared between rows 0 and 1
    ad_len = ad * length

    # ---- finish the lane reduction in-kernel: fold HW/lane_out chunks ---------
    nchunk = HW // lane_out                # lane_out is 128, or HW if HW % 128 != 0

    def fold(v, op):
        acc = v[:, 0:lane_out]
        for c in range(1, nchunk):
            acc = op(acc, v[:, c * lane_out:(c + 1) * lane_out])
        return acc

    out_ref[0, 0] = fold(x * (lab2 - 2.0 * lab + 1.0), jnp.add)   # pred*(label-1)^2
    out_ref[0, 1] = fold((1.0 - x) * lab2, jnp.add)               # (1-pred)*label^2
    out_ref[0, 2] = fold(length, jnp.add)
    out_ref[0, 3] = fold(ad_len, jnp.add)
    out_ref[0, 4] = fold(ad * ad_len, jnp.add)
    out_ref[0, 5] = fold(ad, jnp.minimum)
    out_ref[0, 6] = fold(ad, jnp.maximum)


@functools.partial(
    jax.jit, static_argnames=("miu", "alpha", "beta", "classes", "stream_bf16"))
def fast_ace_loss_2d(prediction, label, *, miu=1.0, alpha=0.001, beta=2.0,
                     classes=4, stream_bf16=False):
    N, C, H, W = prediction.shape
    assert C == classes
    assert label.shape == prediction.shape
    HW = H * W

    # Fill the 8-deep f32 sublane axis by packing batch elements into channels.
    pack = 1
    for p in (8, 4, 2):
        if C * p <= 8 and N % p == 0:
            pack = p
            break
    ngrid = N // pack
    csub = C * pack

    stream_dtype = jnp.bfloat16 if stream_bf16 else jnp.float32
    pred2 = prediction.reshape(ngrid, csub, HW).astype(stream_dtype)
    lab2 = label.reshape(ngrid, csub, HW).astype(stream_dtype)

    lane_out = 128 if HW % 128 == 0 else HW

    itemsize = jnp.dtype(stream_dtype).itemsize
    in_bytes = 2 * N * C * HW * itemsize
    out_bytes = ngrid * 7 * csub * lane_out * 4
    cost = pl.CostEstimate(flops=int(60 * N * C * HW), transcendentals=0,
                           bytes_accessed=int(in_bytes + out_bytes))

    # Only raise the scoped-VMEM limit above the default when the per-step
    # working set (double-buffered ins/outs + f32 temporaries) actually needs it.
    est_vmem = csub * HW * (2 * 2 * itemsize + 12 * 4) + 2 * 7 * csub * lane_out * 4
    vmem_limit = int(min(max(2 * est_vmem, 32 << 20), 100 << 20)) \
        if est_vmem > (30 << 20) else None

    stats = pl.pallas_call(
        functools.partial(ace_stats_kernel, width=W, lane_out=lane_out),
        out_shape=jax.ShapeDtypeStruct((ngrid, 7, csub, lane_out), jnp.float32),
        grid=(ngrid,),
        in_specs=[
            pl.BlockSpec((1, csub, HW), lambda n: (n, 0, 0)),
            pl.BlockSpec((1, csub, HW), lambda n: (n, 0, 0)),
        ],
        out_specs=pl.BlockSpec((1, 7, csub, lane_out), lambda n: (n, 0, 0, 0)),
        compiler_params=pltpu.CompilerParams(
            dimension_semantics=("parallel",),
            vmem_limit_bytes=vmem_limit,
        ),
        cost_estimate=cost,
    )(pred2, lab2)

    s1 = jnp.sum(stats[:, 0])   # sum pred*(label-1)^2
    s2 = jnp.sum(stats[:, 1])   # sum (1-pred)*label^2
    s3 = jnp.sum(stats[:, 2])   # sum length
    s4 = jnp.sum(stats[:, 3])   # sum |diff|*length
    s5 = jnp.sum(stats[:, 4])   # sum |diff|^2*length
    mn = jnp.min(stats[:, 5])   # global min |diff|
    mx = jnp.max(stats[:, 6])   # global max |diff|

    total = float(N * C * H * W)
    region_in = jnp.abs(s1 / total)
    region_out = jnp.abs(s2 / total)
    region = miu * region_in + region_out

    # curvature = (|diff|-mn)/(mx-mn+1e-8); elastic = mean((a + b*cur^2)*len)
    denom = mx - mn + 1e-8
    elastic = (
        alpha * s3 + (beta / (denom * denom)) * (s5 - 2.0 * mn * s4 + mn * mn * s3)
    ) / total
    return region + elastic


def reference_loss(pred, lab, *, miu=1.0, alpha=0.001, beta=2.0, classes=4):
    """Pure-JAX reference matching the PyTorch forward (types='other')."""
    pads = [(0, 0), (0, 0), (1, 1), (1, 1)]
    minp = -jax.lax.reduce_window(
        -pred, -jnp.inf, jax.lax.max, (1, 1, 3, 3), (1, 1, 1, 1), pads
    )
    maxp = jax.lax.reduce_window(
        minp, -jnp.inf, jax.lax.max, (1, 1, 3, 3), (1, 1, 1, 1), pads
    )
    contour = jax.nn.relu(maxp - minp)
    lapk = jnp.ones((3, 3), jnp.float32).at[1, 1].set(-8.0)
    w = jnp.broadcast_to(lapk[None, None], (classes, 1, 3, 3))
    diff = jax.lax.conv_general_dilated(
        pred, w, window_strides=(1, 1), padding=[(1, 1), (1, 1)],
        dimension_numbers=("NCHW", "OIHW", "NCHW"), feature_group_count=classes,
    )
    length = jnp.abs(contour)
    curvature = jnp.abs(diff)
    curvature = (curvature - curvature.min()) / (curvature.max() - curvature.min() + 1e-8)
    region_in = jnp.abs(jnp.mean(pred * (lab - 1.0) ** 2))
    region_out = jnp.abs(jnp.mean((1.0 - pred) * lab * lab))
    region = miu * region_in + region_out
    elastic = jnp.mean((alpha + beta * curvature**2) * length)
    return region + elastic


if __name__ == "__main__":
    key = jax.random.PRNGKey(0)
    k1, k2 = jax.random.split(key)
    N, C, H, W = 2, 4, 16, 16
    prediction = jax.nn.sigmoid(jax.random.normal(k1, (N, C, H, W), jnp.float32))
    label = (jax.random.uniform(k2, (N, C, H, W)) > 0.5).astype(jnp.float32)

    ref = reference_loss(prediction, label, miu=1.0, alpha=0.001, beta=2.0, classes=C)

    # f32-streamed path: matches the f32 reference tightly.
    loss = fast_ace_loss_2d(prediction, label, miu=1.0, alpha=0.001, beta=2.0,
                            classes=C, stream_bf16=False)
    loss = jax.block_until_ready(loss)
    np.testing.assert_allclose(np.asarray(loss), np.asarray(ref), rtol=1e-3, atol=1e-5)

    # bf16-streamed path: halves HBM read traffic; small expected deviation.
    loss_bf16 = fast_ace_loss_2d(prediction, label, miu=1.0, alpha=0.001, beta=2.0,
                                 classes=C, stream_bf16=True)
    loss_bf16 = jax.block_until_ready(loss_bf16)
    np.testing.assert_allclose(np.asarray(loss_bf16), np.asarray(ref), rtol=5e-2, atol=1e-3)

    print("KERNEL_OK")
</pallas_src>

<mosaic_0001>
module attributes {stable_mosaic.version = 11 : i64} {
  func.func @ace_stats_kernel(%arg0: i32, %arg1: memref<1x8x256xf32, #tpu.memory_space<vmem>>, %arg2: memref<1x8x256xf32, #tpu.memory_space<vmem>>, %arg3: memref<1x7x8x128xf32, #tpu.memory_space<vmem>>) attributes {dimension_semantics = [#tpu.dimension_semantics<parallel>], iteration_bounds = array<i64: 1>, scalar_prefetch = 0 : i64, scratch_operands = 0 : i64, tpu.core_type = #tpu.core_type<tc>, window_params = [{transform_indices = @transform_0, window_bounds = array<i64: 1, 8, 256>}, {transform_indices = @transform_1, window_bounds = array<i64: 1, 8, 256>}, {transform_indices = @transform_2, window_bounds = array<i64: 1, 7, 8, 128>}]} {
    %c0 = arith.constant 0 : index
    %c0_0 = arith.constant 0 : index
    %c0_1 = arith.constant 0 : index
    %0 = vector.load %arg1[%c0, %c0_0, %c0_1] : memref<1x8x256xf32, #tpu.memory_space<vmem>>, vector<1x8x256xf32>
    %1 = vector.shape_cast %0 : vector<1x8x256xf32> to vector<8x256xf32>
    %c0_2 = arith.constant 0 : index
    %c0_3 = arith.constant 0 : index
    %c0_4 = arith.constant 0 : index
    %2 = vector.load %arg2[%c0_2, %c0_3, %c0_4] : memref<1x8x256xf32, #tpu.memory_space<vmem>>, vector<1x8x256xf32>
    %3 = vector.shape_cast %2 : vector<1x8x256xf32> to vector<8x256xf32>
    %4 = tpu.iota {dimensions = array<i32: 1>} : vector<1x256xi32>
    %c16_i32 = arith.constant 16 : i32
    %c0_i32 = arith.constant 0 : i32
    %5 = arith.cmpi eq, %c16_i32, %c0_i32 : i32
    %c1_i32 = arith.constant 1 : i32
    %6 = arith.select %5, %c1_i32, %c16_i32 : i32
    %7 = vector.broadcast %6 : i32 to vector<1x256xi32>
    %8 = arith.remsi %4, %7 : vector<1x256xi32>
    %c0_i32_5 = arith.constant 0 : i32
    %9 = vector.broadcast %c0_i32_5 : i32 to vector<1x256xi32>
    %10 = arith.cmpi ne, %8, %9 : vector<1x256xi32>
    %c0_i32_6 = arith.constant 0 : i32
    %11 = vector.broadcast %c0_i32_6 : i32 to vector<1x256xi32>
    %12 = arith.cmpi slt, %8, %11 : vector<1x256xi32>
    %c0_i32_7 = arith.constant 0 : i32
    %13 = arith.cmpi slt, %6, %c0_i32_7 : i32
    %14 = vector.broadcast %13 : i1 to vector<1x256xi1>
    %15 = vector.broadcast %14 : vector<1x256xi1> to vector<1x256xi1>
    %16 = arith.xori %12, %15 : vector<1x256xi1>
    %17 = arith.andi %16, %10 : vector<1x256xi1>
    %18 = vector.broadcast %6 : i32 to vector<1x256xi32>
    %19 = arith.addi %8, %18 : vector<1x256xi32>
    %20 = arith.select %17, %19, %8 : vector<1x256xi1>, vector<1x256xi32>
    %c0_i32_8 = arith.constant 0 : i32
    %21 = vector.broadcast %c0_i32_8 : i32 to vector<1x256xi32>
    %22 = arith.cmpi eq, %20, %21 : vector<1x256xi32>
    %c15_i32 = arith.constant 15 : i32
    %23 = vector.broadcast %c15_i32 : i32 to vector<1x256xi32>
    %24 = arith.cmpi eq, %20, %23 : vector<1x256xi32>
    %c16_i32_9 = arith.constant 16 : i32
    %25 = vector.broadcast %c16_i32_9 : i32 to vector<1x256xi32>
    %26 = arith.cmpi slt, %4, %25 : vector<1x256xi32>
    %c240_i32 = arith.constant 240 : i32
    %27 = vector.broadcast %c240_i32 : i32 to vector<1x256xi32>
    %28 = arith.cmpi sge, %4, %27 : vector<1x256xi32>
    %c255_i32 = arith.constant 255 : i32
    %29 = tpu.dynamic_rotate %1 by %c255_i32 dim 1 : vector<8x256xf32>, i32 -> vector<8x256xf32>
    %c1_i32_10 = arith.constant 1 : i32
    %30 = tpu.dynamic_rotate %1 by %c1_i32_10 dim 1 : vector<8x256xf32>, i32 -> vector<8x256xf32>
    %cst = arith.constant 0x7F800000 : f32
    %31 = vector.shape_cast %24 : vector<1x256xi1> to vector<1x256xi1>
    %32 = vector.broadcast %31 : vector<1x256xi1> to vector<8x256xi1>
    %33 = vector.broadcast %cst : f32 to vector<8x256xf32>
    %34 = arith.select %32, %33, %29 : vector<8x256xi1>, vector<8x256xf32>
    %cst_11 = arith.constant 0x7F800000 : f32
    %35 = vector.shape_cast %22 : vector<1x256xi1> to vector<1x256xi1>
    %36 = vector.broadcast %35 : vector<1x256xi1> to vector<8x256xi1>
    %37 = vector.broadcast %cst_11 : f32 to vector<8x256xf32>
    %38 = arith.select %36, %37, %30 : vector<8x256xi1>, vector<8x256xf32>
    %39 = arith.minimumf %34, %38 : vector<8x256xf32>
    %40 = arith.minimumf %1, %39 : vector<8x256xf32>
    %c240_i32_12 = arith.constant 240 : i32
    %41 = tpu.dynamic_rotate %40 by %c240_i32_12 dim 1 : vector<8x256xf32>, i32 -> vector<8x256xf32>
    %cst_13 = arith.constant 0x7F800000 : f32
    %42 = vector.shape_cast %28 : vector<1x256xi1> to vector<1x256xi1>
    %43 = vector.broadcast %42 : vector<1x256xi1> to vector<8x256xi1>
    %44 = vector.broadcast %cst_13 : f32 to vector<8x256xf32>
    %45 = arith.select %43, %44, %41 : vector<8x256xi1>, vector<8x256xf32>
    %c16_i32_14 = arith.constant 16 : i32
    %46 = tpu.dynamic_rotate %40 by %c16_i32_14 dim 1 : vector<8x256xf32>, i32 -> vector<8x256xf32>
    %cst_15 = arith.constant 0x7F800000 : f32
    %47 = vector.shape_cast %26 : vector<1x256xi1> to vector<1x256xi1>
    %48 = vector.broadcast %47 : vector<1x256xi1> to vector<8x256xi1>
    %49 = vector.broadcast %cst_15 : f32 to vector<8x256xf32>
    %50 = arith.select %48, %49, %46 : vector<8x256xi1>, vector<8x256xf32>
    %51 = arith.minimumf %45, %50 : vector<8x256xf32>
    %52 = arith.minimumf %40, %51 : vector<8x256xf32>
    %cst_16 = arith.constant 0.000000e+00 : f32
    %cst_17 = arith.constant 0x7F800000 : f32
    %53 = arith.subf %cst_16, %cst_17 : f32
    %c255_i32_18 = arith.constant 255 : i32
    %54 = tpu.dynamic_rotate %52 by %c255_i32_18 dim 1 : vector<8x256xf32>, i32 -> vector<8x256xf32>
    %55 = vector.shape_cast %24 : vector<1x256xi1> to vector<1x256xi1>
    %56 = vector.broadcast %55 : vector<1x256xi1> to vector<8x256xi1>
    %57 = vector.broadcast %53 : f32 to vector<8x256xf32>
    %58 = arith.select %56, %57, %54 : vector<8x256xi1>, vector<8x256xf32>
    %cst_19 = arith.constant 0.000000e+00 : f32
    %cst_20 = arith.constant 0x7F800000 : f32
    %59 = arith.subf %cst_19, %cst_20 : f32
    %c1_i32_21 = arith.constant 1 : i32
    %60 = tpu.dynamic_rotate %52 by %c1_i32_21 dim 1 : vector<8x256xf32>, i32 -> vector<8x256xf32>
    %61 = vector.shape_cast %22 : vector<1x256xi1> to vector<1x256xi1>
    %62 = vector.broadcast %61 : vector<1x256xi1> to vector<8x256xi1>
    %63 = vector.broadcast %59 : f32 to vector<8x256xf32>
    %64 = arith.select %62, %63, %60 : vector<8x256xi1>, vector<8x256xf32>
    %65 = arith.maximumf %58, %64 : vector<8x256xf32>
    %66 = arith.maximumf %52, %65 : vector<8x256xf32>
    %cst_22 = arith.constant 0.000000e+00 : f32
    %cst_23 = arith.constant 0x7F800000 : f32
    %67 = arith.subf %cst_22, %cst_23 : f32
    %c240_i32_24 = arith.constant 240 : i32
    %68 = tpu.dynamic_rotate %66 by %c240_i32_24 dim 1 : vector<8x256xf32>, i32 -> vector<8x256xf32>
    %69 = vector.shape_cast %28 : vector<1x256xi1> to vector<1x256xi1>
    %70 = vector.broadcast %69 : vector<1x256xi1> to vector<8x256xi1>
    %71 = vector.broadcast %67 : f32 to vector<8x256xf32>
    %72 = arith.select %70, %71, %68 : vector<8x256xi1>, vector<8x256xf32>
    %cst_25 = arith.constant 0.000000e+00 : f32
    %cst_26 = arith.constant 0x7F800000 : f32
    %73 = arith.subf %cst_25, %cst_26 : f32
    %c16_i32_27 = arith.constant 16 : i32
    %74 = tpu.dynamic_rotate %66 by %c16_i32_27 dim 1 : vector<8x256xf32>, i32 -> vector<8x256xf32>
    %75 = vector.shape_cast %26 : vector<1x256xi1> to vector<1x256xi1>
    %76 = vector.broadcast %75 : vector<1x256xi1> to vector<8x256xi1>
    %77 = vector.broadcast %73 : f32 to vector<8x256xf32>
    %78 = arith.select %76, %77, %74 : vector<8x256xi1>, vector<8x256xf32>
    %79 = arith.maximumf %72, %78 : vector<8x256xf32>
    %80 = arith.maximumf %66, %79 : vector<8x256xf32>
    %81 = arith.subf %80, %52 : vector<8x256xf32>
    %cst_28 = arith.constant 0.000000e+00 : f32
    %82 = vector.broadcast %cst_28 : f32 to vector<8x256xf32>
    %83 = arith.maximumf %81, %82 : vector<8x256xf32>
    %cst_29 = arith.constant 0.000000e+00 : f32
    %84 = vector.shape_cast %24 : vector<1x256xi1> to vector<1x256xi1>
    %85 = vector.broadcast %84 : vector<1x256xi1> to vector<8x256xi1>
    %86 = vector.broadcast %cst_29 : f32 to vector<8x256xf32>
    %87 = arith.select %85, %86, %29 : vector<8x256xi1>, vector<8x256xf32>
    %88 = arith.addf %1, %87 : vector<8x256xf32>
    %cst_30 = arith.constant 0.000000e+00 : f32
    %89 = vector.shape_cast %22 : vector<1x256xi1> to vector<1x256xi1>
    %90 = vector.broadcast %89 : vector<1x256xi1> to vector<8x256xi1>
    %91 = vector.broadcast %cst_30 : f32 to vector<8x256xf32>
    %92 = arith.select %90, %91, %30 : vector<8x256xi1>, vector<8x256xf32>
    %93 = arith.addf %88, %92 : vector<8x256xf32>
    %c240_i32_31 = arith.constant 240 : i32
    %94 = tpu.dynamic_rotate %93 by %c240_i32_31 dim 1 : vector<8x256xf32>, i32 -> vector<8x256xf32>
    %cst_32 = arith.constant 0.000000e+00 : f32
    %95 = vector.shape_cast %28 : vector<1x256xi1> to vector<1x256xi1>
    %96 = vector.broadcast %95 : vector<1x256xi1> to vector<8x256xi1>
    %97 = vector.broadcast %cst_32 : f32 to vector<8x256xf32>
    %98 = arith.select %96, %97, %94 : vector<8x256xi1>, vector<8x256xf32>
    %99 = arith.addf %93, %98 : vector<8x256xf32>
    %c16_i32_33 = arith.constant 16 : i32
    %100 = tpu.dynamic_rotate %93 by %c16_i32_33 dim 1 : vector<8x256xf32>, i32 -> vector<8x256xf32>
    %cst_34 = arith.constant 0.000000e+00 : f32
    %101 = vector.shape_cast %26 : vector<1x256xi1> to vector<1x256xi1>
    %102 = vector.broadcast %101 : vector<1x256xi1> to vector<8x256xi1>
    %103 = vector.broadcast %cst_34 : f32 to vector<8x256xf32>
    %104 = arith.select %102, %103, %100 : vector<8x256xi1>, vector<8x256xf32>
    %105 = arith.addf %99, %104 : vector<8x256xf32>
    %cst_35 = arith.constant 9.000000e+00 : f32
    %106 = vector.broadcast %cst_35 : f32 to vector<8x256xf32>
    %107 = arith.mulf %106, %1 : vector<8x256xf32>
    %108 = arith.subf %105, %107 : vector<8x256xf32>
    %109 = math.absf %108 : vector<8x256xf32>
    %110 = arith.mulf %3, %3 : vector<8x256xf32>
    %111 = arith.mulf %109, %83 : vector<8x256xf32>
    %cst_36 = arith.constant 2.000000e+00 : f32
    %112 = vector.broadcast %cst_36 : f32 to vector<8x256xf32>
    %113 = arith.mulf %112, %3 : vector<8x256xf32>
    %114 = arith.subf %110, %113 : vector<8x256xf32>
    %cst_37 = arith.constant 1.000000e+00 : f32
    %115 = vector.broadcast %cst_37 : f32 to vector<8x256xf32>
    %116 = arith.addf %114, %115 : vector<8x256xf32>
    %117 = arith.mulf %1, %116 : vector<8x256xf32>
    %118 = vector.extract_strided_slice %117 {offsets = [0, 0], sizes = [8, 128], strides = [1, 1]} : vector<8x256xf32> to vector<8x128xf32>
    %119 = vector.extract_strided_slice %117 {offsets = [0, 128], sizes = [8, 128], strides = [1, 1]} : vector<8x256xf32> to vector<8x128xf32>
    %120 = arith.addf %118, %119 : vector<8x128xf32>
    %c0_38 = arith.constant 0 : index
    %c0_39 = arith.constant 0 : index
    %c0_40 = arith.constant 0 : index
    %c0_41 = arith.constant 0 : index
    %121 = vector.load %arg3[%c0_38, %c0_39, %c0_40, %c0_41] : memref<1x7x8x128xf32, #tpu.memory_space<vmem>>, vector<1x1x8x128xf32>
    %122 = vector.shape_cast %121 : vector<1x1x8x128xf32> to vector<8x128xf32>
    %123 = vector.shape_cast %120 : vector<8x128xf32> to vector<1x1x8x128xf32>
    tpu.vector_store %arg3[%c0_38, %c0_39, %c0_40, %c0_41], %123 {strides = array<i32>} : memref<1x7x8x128xf32, #tpu.memory_space<vmem>>, vector<1x1x8x128xf32>,
    %cst_42 = arith.constant 1.000000e+00 : f32
    %124 = vector.broadcast %cst_42 : f32 to vector<8x256xf32>
    %125 = arith.subf %124, %1 : vector<8x256xf32>
    %126 = arith.mulf %125, %110 : vector<8x256xf32>
    %127 = vector.extract_strided_slice %126 {offsets = [0, 0], sizes = [8, 128], strides = [1, 1]} : vector<8x256xf32> to vector<8x128xf32>
    %128 = vector.extract_strided_slice %126 {offsets = [0, 128], sizes = [8, 128], strides = [1, 1]} : vector<8x256xf32> to vector<8x128xf32>
    %129 = arith.addf %127, %128 : vector<8x128xf32>
    %c0_43 = arith.constant 0 : index
    %c1 = arith.constant 1 : index
    %c0_44 = arith.constant 0 : index
    %c0_45 = arith.constant 0 : index
    %130 = vector.load %arg3[%c0_43, %c1, %c0_44, %c0_45] : memref<1x7x8x128xf32, #tpu.memory_space<vmem>>, vector<1x1x8x128xf32>
    %131 = vector.shape_cast %130 : vector<1x1x8x128xf32> to vector<8x128xf32>
    %132 = vector.shape_cast %129 : vector<8x128xf32> to vector<1x1x8x128xf32>
    tpu.vector_store %arg3[%c0_43, %c1, %c0_44, %c0_45], %132 {strides = array<i32>} : memref<1x7x8x128xf32, #tpu.memory_space<vmem>>, vector<1x1x8x128xf32>,
    %133 = vector.extract_strided_slice %83 {offsets = [0, 0], sizes = [8, 128], strides = [1, 1]} : vector<8x256xf32> to vector<8x128xf32>
    %134 = vector.extract_strided_slice %83 {offsets = [0, 128], sizes = [8, 128], strides = [1, 1]} : vector<8x256xf32> to vector<8x128xf32>
    %135 = arith.addf %133, %134 : vector<8x128xf32>
    %c0_46 = arith.constant 0 : index
    %c2 = arith.constant 2 : index
    %c0_47 = arith.constant 0 : index
    %c0_48 = arith.constant 0 : index
    %136 = vector.load %arg3[%c0_46, %c2, %c0_47, %c0_48] : memref<1x7x8x128xf32, #tpu.memory_space<vmem>>, vector<1x1x8x128xf32>
    %137 = vector.shape_cast %136 : vector<1x1x8x128xf32> to vector<8x128xf32>
    %138 = vector.shape_cast %135 : vector<8x128xf32> to vector<1x1x8x128xf32>
    tpu.vector_store %arg3[%c0_46, %c2, %c0_47, %c0_48], %138 {strides = array<i32>} : memref<1x7x8x128xf32, #tpu.memory_space<vmem>>, vector<1x1x8x128xf32>,
    %139 = vector.extract_strided_slice %111 {offsets = [0, 0], sizes = [8, 128], strides = [1, 1]} : vector<8x256xf32> to vector<8x128xf32>
    %140 = vector.extract_strided_slice %111 {offsets = [0, 128], sizes = [8, 128], strides = [1, 1]} : vector<8x256xf32> to vector<8x128xf32>
    %141 = arith.addf %139, %140 : vector<8x128xf32>
    %c0_49 = arith.constant 0 : index
    %c3 = arith.constant 3 : index
    %c0_50 = arith.constant 0 : index
    %c0_51 = arith.constant 0 : index
    %142 = vector.load %arg3[%c0_49, %c3, %c0_50, %c0_51] : memref<1x7x8x128xf32, #tpu.memory_space<vmem>>, vector<1x1x8x128xf32>
    %143 = vector.shape_cast %142 : vector<1x1x8x128xf32> to vector<8x128xf32>
    %144 = vector.shape_cast %141 : vector<8x128xf32> to vector<1x1x8x128xf32>
    tpu.vector_store %arg3[%c0_49, %c3, %c0_50, %c0_51], %144 {strides = array<i32>} : memref<1x7x8x128xf32, #tpu.memory_space<vmem>>, vector<1x1x8x128xf32>,
    %145 = arith.mulf %109, %111 : vector<8x256xf32>
    %146 = vector.extract_strided_slice %145 {offsets = [0, 0], sizes = [8, 128], strides = [1, 1]} : vector<8x256xf32> to vector<8x128xf32>
    %147 = vector.extract_strided_slice %145 {offsets = [0, 128], sizes = [8, 128], strides = [1, 1]} : vector<8x256xf32> to vector<8x128xf32>
    %148 = arith.addf %146, %147 : vector<8x128xf32>
    %c0_52 = arith.constant 0 : index
    %c4 = arith.constant 4 : index
    %c0_53 = arith.constant 0 : index
    %c0_54 = arith.constant 0 : index
    %149 = vector.load %arg3[%c0_52, %c4, %c0_53, %c0_54] : memref<1x7x8x128xf32, #tpu.memory_space<vmem>>, vector<1x1x8x128xf32>
    %150 = vector.shape_cast %149 : vector<1x1x8x128xf32> to vector<8x128xf32>
    %151 = vector.shape_cast %148 : vector<8x128xf32> to vector<1x1x8x128xf32>
    tpu.vector_store %arg3[%c0_52, %c4, %c0_53, %c0_54], %151 {strides = array<i32>} : memref<1x7x8x128xf32, #tpu.memory_space<vmem>>, vector<1x1x8x128xf32>,
    %152 = vector.extract_strided_slice %109 {offsets = [0, 0], sizes = [8, 128], strides = [1, 1]} : vector<8x256xf32> to vector<8x128xf32>
    %153 = vector.extract_strided_slice %109 {offsets = [0, 128], sizes = [8, 128], strides = [1, 1]} : vector<8x256xf32> to vector<8x128xf32>
    %154 = arith.minimumf %152, %153 : vector<8x128xf32>
    %c0_55 = arith.constant 0 : index
    %c5 = arith.constant 5 : index
    %c0_56 = arith.constant 0 : index
    %c0_57 = arith.constant 0 : index
    %155 = vector.load %arg3[%c0_55, %c5, %c0_56, %c0_57] : memref<1x7x8x128xf32, #tpu.memory_space<vmem>>, vector<1x1x8x128xf32>
    %156 = vector.shape_cast %155 : vector<1x1x8x128xf32> to vector<8x128xf32>
    %157 = vector.shape_cast %154 : vector<8x128xf32> to vector<1x1x8x128xf32>
    tpu.vector_store %arg3[%c0_55, %c5, %c0_56, %c0_57], %157 {strides = array<i32>} : memref<1x7x8x128xf32, #tpu.memory_space<vmem>>, vector<1x1x8x128xf32>,
    %158 = vector.extract_strided_slice %109 {offsets = [0, 0], sizes = [8, 128], strides = [1, 1]} : vector<8x256xf32> to vector<8x128xf32>
    %159 = vector.extract_strided_slice %109 {offsets = [0, 128], sizes = [8, 128], strides = [1, 1]} : vector<8x256xf32> to vector<8x128xf32>
    %160 = arith.maximumf %158, %159 : vector<8x128xf32>
    %c0_58 = arith.constant 0 : index
    %c6 = arith.constant 6 : index
    %c0_59 = arith.constant 0 : index
    %c0_60 = arith.constant 0 : index
    %161 = vector.load %arg3[%c0_58, %c6, %c0_59, %c0_60] : memref<1x7x8x128xf32, #tpu.memory_space<vmem>>, vector<1x1x8x128xf32>
    %162 = vector.shape_cast %161 : vector<1x1x8x128xf32> to vector<8x128xf32>
    %163 = vector.shape_cast %160 : vector<8x128xf32> to vector<1x1x8x128xf32>
    tpu.vector_store %arg3[%c0_58, %c6, %c0_59, %c0_60], %163 {strides = array<i32>} : memref<1x7x8x128xf32, #tpu.memory_space<vmem>>, vector<1x1x8x128xf32>,
    return
  }
  func.func @transform_0(%arg0: i32) -> (i32, i32, i32) {
    %c0_i32 = arith.constant 0 : i32
    %c0_i32_0 = arith.constant 0 : i32
    %c0_i32_1 = arith.constant 0 : i32
    return %arg0, %c0_i32, %c0_i32_0 : i32, i32, i32
  }
  func.func @transform_1(%arg0: i32) -> (i32, i32, i32) {
    %c0_i32 = arith.constant 0 : i32
    %c0_i32_0 = arith.constant 0 : i32
    %c0_i32_1 = arith.constant 0 : i32
    return %arg0, %c0_i32, %c0_i32_0 : i32, i32, i32
  }
  func.func @transform_2(%arg0: i32) -> (i32, i32, i32, i32) {
    %c0_i32 = arith.constant 0 : i32
    %c0_i32_0 = arith.constant 0 : i32
    %c0_i32_1 = arith.constant 0 : i32
    %c0_i32_2 = arith.constant 0 : i32
    return %arg0, %c0_i32, %c0_i32_0, %c0_i32_1 : i32, i32, i32, i32
  }
}

</mosaic_0001>

<llo_original>
// kernel: fast_ace_loss_2d.1
$region0: #{fast_ace_loss_2d.1}
  #allocation0 [shape = 'u32[]', space=smem, size = 0x4, offset = 0x4, fixed_abs, tag = 'smem constant byte address 0x4 - core index']
  #allocation1 [shape = 'u32[144,128]{1,0:T(1,128)}', space=vmem, size = 0x12000, scoped, tag = 'internal scratch']
  %s0 = inlined_call_operand.vmem [shape: f32[1,8,256], index: 0, kind: input, shape index: {}]
  %s1 = inlined_call_operand.vmem [shape: f32[1,8,256], index: 1, kind: input, shape index: {}]
  %s2 = inlined_call_operand.vmem [shape: f32[1,7,8,128], index: 2, kind: output, shape index: {}]
  %s3 = sld [smem:[#allocation0]]
  $region18: #{fast_ace_loss_2d.1} parent=0
    _
  %s5 = ssub.s32 1, %s3
  %s6 = scalar_select 0, %s5, %s3
  // Predicated region
  $region2: #{fast_ace_loss_2d.1} parent=0 // pred_check
    _
  $region3: #{fast_ace_loss_2d.1} parent=0 // pred_check_branch
    %8 = sbr.rel (0) target = $region5
  $region4: #{fast_ace_loss_2d.1} parent=0 // pred_region
    _
  $region5: #{fast_ace_loss_2d.1} parent=0 // pred_fallthru
    _
  // Predicated region
  $region6: #{fast_ace_loss_2d.1} parent=0 // pred_check
    _
  $region7: #{fast_ace_loss_2d.1} parent=0 // pred_check_branch
    %10 = sbr.rel (0) target = $region9
  $region8: #{fast_ace_loss_2d.1} parent=0 // pred_region
    _
  $region9: #{fast_ace_loss_2d.1} parent=0 // pred_fallthru
    _
  %v11 = vld [vmem:[%s0] sm:$0xff]
  %v12 = vld [vmem:[%s0 + $0x8] sm:$0xff]
  %v13 = vld [vmem:[%s1] sm:$0xff]
  %v14 = vld [vmem:[%s1 + $0x8] sm:$0xff]
  %v15 = vlaneseq
  %v16 = vand.u32 %v15, 127
  %v17 = vadd.s32 %v16, 128
  %vm18 = vcmp.lt.s32.totalorder %v16, 0
  %v19 = vsub.s32 0, %v16
  %v20 = vsel %vm18, %v19, %v16
  %v21 = vshrl.u32 %v20, 4
  %v22 = vand.u32 %v20, 15
  %v23 = vsub.s32 0, %v22
  %v24 = vsel %vm18, %v23, %v22
  %vm25 = vcmp.lt.s32.totalorder %v17, 0
  %v26 = vsub.s32 0, %v17
  %v27 = vsel %vm25, %v26, %v17
  %v28 = vshrl.u32 %v27, 4
  %v29 = vand.u32 %v27, 15
  %v30 = vsub.s32 0, %v29
  %v31 = vsel %vm25, %v30, %v29
  %vm32 = vcmp.ne.s32.totalorder %v24, 0
  %vm33 = vcmp.ne.s32.totalorder %v31, 0
  %vm34 = vcmp.lt.s32.totalorder %v24, 0
  %vm35 = vcmp.lt.s32.totalorder %v31, 0
  %vm36 = vmand %vm34, %vm32
  %vm37 = vmand %vm35, %vm33
  %v38 = vadd.s32 %v24, 16
  %v39 = vadd.s32 %v31, 16
  %v40 = vsel %vm36, %v38, %v24
  %v41 = vsel %vm37, %v39, %v31
  %vm42 = vcmp.eq.s32.totalorder %v40, 0
  %vm43 = vcmp.eq.s32.totalorder %v41, 0
  %vm44 = vcmp.eq.s32.totalorder %v40, 15
  %vm45 = vcmp.eq.s32.totalorder %v41, 15
  %vm46 = vcmp.lt.s32.totalorder %v16, 16
  %vm47 = vcmp.lt.s32.totalorder %v17, 16
  %vm48 = vcmp.ge.s32.totalorder %v16, 240
  %vm49 = vcmp.ge.s32.totalorder %v17, 240
  %50 = vrot.lane.b32.xlu0 %v11, 127
  %v51 = vpop.permute.xlu0 %50
  %52 = vrot.lane.b32.xlu0 %v12, 127
  %v53 = vpop.permute.xlu0 %52
  %vm54 = vcmp.lt.s32.totalorder %v16, 127
  %v55 = vsel %vm54, %v51, %v53
  %v56 = vsel %vm54, %v53, %v51
  %57 = vrot.lane.b32.xlu0 %v11, 1
  %v58 = vpop.permute.xlu0 %57
  %59 = vrot.lane.b32.xlu0 %v12, 1
  %v60 = vpop.permute.xlu0 %59
  %vm61 = vcmp.lt.s32.totalorder %v16, 1
  %v62 = vsel %vm61, %v58, %v60
  %v63 = vsel %vm61, %v60, %v58
  %v64 = vsel %vm44, 1, 0
  %v65 = vsel %vm45, 1, 0
  %vm66 = vcmp.eq.s32.totalorder %v64, 1
  %vm67 = vcmp.eq.s32.totalorder %v65, 1
  %v68 = vsel %vm66, inf, %v55
  %v69 = vsel %vm67, inf, %v56
  %v70 = vsel %vm42, 1, 0
  %v71 = vsel %vm43, 1, 0
  %vm72 = vcmp.eq.s32.totalorder %v70, 1
  %vm73 = vcmp.eq.s32.totalorder %v71, 1
  %v74 = vsel %vm72, inf, %v63
  %v75 = vsel %vm73, inf, %v62
  %v76 = vmin.f32 %v68, %v74
  %v77 = vmin.f32 %v69, %v75
  %v78 = vmin.f32 %v11, %v76
  %v79 = vmin.f32 %v12, %v77
  %80 = vrot.lane.b32.xlu0 %v78, 112
  %v81 = vpop.permute.xlu0 %80
  %82 = vrot.lane.b32.xlu0 %v79, 112
  %v83 = vpop.permute.xlu0 %82
  %vm84 = vcmp.lt.s32.totalorder %v16, 112
  %v85 = vsel %vm84, %v81, %v83
  %v86 = vsel %vm84, %v83, %v81
  %v87 = vsel %vm48, 1, 0
  %v88 = vsel %vm49, 1, 0
  %vm89 = vcmp.eq.s32.totalorder %v87, 1
  %vm90 = vcmp.eq.s32.totalorder %v88, 1
  %v91 = vsel %vm89, inf, %v85
  %v92 = vsel %vm90, inf, %v86
  %93 = vrot.lane.b32.xlu0 %v78, 16
  %v94 = vpop.permute.xlu0 %93
  %95 = vrot.lane.b32.xlu0 %v79, 16
  %v96 = vpop.permute.xlu0 %95
  %v97 = vsel %vm46, %v94, %v96
  %v98 = vsel %vm46, %v96, %v94
  %v99 = vsel %vm46, 1, 0
  %v100 = vsel %vm47, 1, 0
  %vm101 = vcmp.eq.s32.totalorder %v99, 1
  %vm102 = vcmp.eq.s32.totalorder %v100, 1
  %v103 = vsel %vm101, inf, %v98
  %v104 = vsel %vm102, inf, %v97
  %v105 = vmin.f32 %v91, %v103
  %v106 = vmin.f32 %v92, %v104
  %v107 = vmin.f32 %v78, %v105
  %v108 = vmin.f32 %v79, %v106
  %109 = vrot.lane.b32.xlu0 %v107, 127
  %v110 = vpop.permute.xlu0 %109
  %111 = vrot.lane.b32.xlu0 %v108, 127
  %v112 = vpop.permute.xlu0 %111
  %v113 = vsel %vm54, %v110, %v112
  %v114 = vsel %vm54, %v112, %v110
  %v115 = vsel %vm66, -inf, %v113
  %v116 = vsel %vm67, -inf, %v114
  %117 = vrot.lane.b32.xlu0 %v107, 1
  %v118 = vpop.permute.xlu0 %117
  %119 = vrot.lane.b32.xlu0 %v108, 1
  %v120 = vpop.permute.xlu0 %119
  %v121 = vsel %vm61, %v118, %v120
  %v122 = vsel %vm61, %v120, %v118
  %v123 = vsel %vm72, -inf, %v122
  %v124 = vsel %vm73, -inf, %v121
  %v125 = vmax.f32 %v115, %v123
  %v126 = vmax.f32 %v116, %v124
  %v127 = vmax.f32 %v107, %v125
  %v128 = vmax.f32 %v108, %v126
  %129 = vrot.lane.b32.xlu0 %v127, 112
  %v130 = vpop.permute.xlu0 %129
  %131 = vrot.lane.b32.xlu0 %v128, 112
  %v132 = vpop.permute.xlu0 %131
  %v133 = vsel %vm84, %v130, %v132
  %v134 = vsel %vm84, %v132, %v130
  %v135 = vsel %vm89, -inf, %v133
  %v136 = vsel %vm90, -inf, %v134
  %137 = vrot.lane.b32.xlu0 %v127, 16
  %v138 = vpop.permute.xlu0 %137
  %139 = vrot.lane.b32.xlu0 %v128, 16
  %v140 = vpop.permute.xlu0 %139
  %v141 = vsel %vm46, %v138, %v140
  %v142 = vsel %vm46, %v140, %v138
  %v143 = vsel %vm101, -inf, %v142
  %v144 = vsel %vm102, -inf, %v141
  %v145 = vmax.f32 %v135, %v143
  %v146 = vmax.f32 %v136, %v144
  %v147 = vmax.f32 %v127, %v145
  %v148 = vmax.f32 %v128, %v146
  %v149 = vsub.f32 %v147, %v107
  %v150 = vsub.f32 %v148, %v108
  %v151 = vmax.f32 %v149, 0.0
  %v152 = vmax.f32 %v150, 0.0
  %v153 = vsel %vm66, 0.0, %v55
  %v154 = vsel %vm67, 0.0, %v56
  %v155 = vadd.f32 %v11, %v153
  %v156 = vadd.f32 %v12, %v154
  %v157 = vsel %vm72, 0.0, %v63
  %v158 = vsel %vm73, 0.0, %v62
  %v159 = vadd.f32 %v155, %v157
  %v160 = vadd.f32 %v156, %v158
  %161 = vrot.lane.b32.xlu0 %v159, 112
  %v162 = vpop.permute.xlu0 %161
  %163 = vrot.lane.b32.xlu0 %v160, 112
  %v164 = vpop.permute.xlu0 %163
  %v165 = vsel %vm84, %v162, %v164
  %v166 = vsel %vm84, %v164, %v162
  %v167 = vsel %vm89, 0.0, %v165
  %v168 = vsel %vm90, 0.0, %v166
  %v169 = vadd.f32 %v159, %v167
  %v170 = vadd.f32 %v160, %v168
  %171 = vrot.lane.b32.xlu0 %v159, 16
  %v172 = vpop.permute.xlu0 %171
  %173 = vrot.lane.b32.xlu0 %v160, 16
  %v174 = vpop.permute.xlu0 %173
  %v175 = vsel %vm46, %v172, %v174
  %v176 = vsel %vm46, %v174, %v172
  %v177 = vsel %vm101, 0.0, %v176
  %v178 = vsel %vm102, 0.0, %v175
  %v179 = vadd.f32 %v169, %v177
  %v180 = vadd.f32 %v170, %v178
  %v181 = vmul.f32 %v11, 9.0
  %v182 = vmul.f32 %v12, 9.0
  %v183 = vsub.f32 %v179, %v181
  %v184 = vsub.f32 %v180, %v182
  %v185 = vand.u32 2147483647, %v183
  %v186 = vand.u32 2147483647, %v184
  %v187 = vmul.f32 %v13, %v13
  %v188 = vmul.f32 %v14, %v14
  %v189 = vmul.f32 %v185, %v151
  %v190 = vmul.f32 %v186, %v152
  %v191 = vmul.f32 %v13, 2.0
  %v192 = vmul.f32 %v14, 2.0
  %v193 = vsub.f32 %v187, %v191
  %v194 = vsub.f32 %v188, %v192
  %v195 = vadd.f32 %v193, 1.0
  %v196 = vadd.f32 %v194, 1.0
  %v197 = vmul.f32 %v11, %v195
  %v198 = vmul.f32 %v12, %v196
  %v199 = vadd.f32 %v197, %v198
  %200 = vst [vmem:[%s2] sm:$0xff] %v199
  %v201 = vsub.f32 1.0, %v11
  %v202 = vsub.f32 1.0, %v12
  %v203 = vmul.f32 %v201, %v187
  %v204 = vmul.f32 %v202, %v188
  %v205 = vadd.f32 %v203, %v204
  %s206 = scalar_lea.vmem %s2, 8
  %207 = vst [vmem:[%s206] sm:$0xff] %v205
  %v208 = vadd.f32 %v151, %v152
  %s209 = scalar_lea.vmem %s2, 16
  %210 = vst [vmem:[%s209] sm:$0xff] %v208
  %v211 = vadd.f32 %v189, %v190
  %s212 = scalar_lea.vmem %s2, 24
  %213 = vst [vmem:[%s212] sm:$0xff] %v211
  %v214 = vmul.f32 %v185, %v189
  %v215 = vmul.f32 %v186, %v190
  %v216 = vadd.f32 %v214, %v215
  %s217 = scalar_lea.vmem %s2, 32
  %218 = vst [vmem:[%s217] sm:$0xff] %v216
  %v219 = vmin.f32 %v185, %v186
  %s220 = scalar_lea.vmem %s2, 40
  %221 = vst [vmem:[%s220] sm:$0xff] %v219
  %v222 = vmax.f32 %v185, %v186
  %s223 = scalar_lea.vmem %s2, 48
  %224 = vst [vmem:[%s223] sm:$0xff] %v222
  // Predicated region
  $region10: #{fast_ace_loss_2d.1} parent=0 // pred_check
    _
  $region11: #{fast_ace_loss_2d.1} parent=0 // pred_check_branch
    %226 = sbr.rel (0) target = $region13
  $region12: #{fast_ace_loss_2d.1} parent=0 // pred_region
    _
  $region13: #{fast_ace_loss_2d.1} parent=0 // pred_fallthru
    _
  // Predicated region
  $region14: #{fast_ace_loss_2d.1} parent=0 // pred_check
    _
  $region15: #{fast_ace_loss_2d.1} parent=0 // pred_check_branch
    %228 = sbr.rel (0) target = $region17
  $region16: #{fast_ace_loss_2d.1} parent=0 // pred_region
    _
  $region17: #{fast_ace_loss_2d.1} parent=0 // pred_fallthru
    _

</llo_original>
